<compile_context>
chip_gen: v6e
topology: v6e:2x2x1
jax: 0.10.0
libtpu: 0.0.40
codegen_flags: <defaults>
</compile_context>

<pallas_src>
import functools

import jax
import jax.numpy as jnp
from jax.experimental import pallas as pl
from jax.experimental.pallas import tpu as pltpu


def _cosine_logits_kernel(x_ref, w_ref, o_ref):
    # x_ref: (tm, D) pre-normalized activations (bf16/f32).
    # w_ref: (D, tn) pre-normalized, temperature-scaled, transposed weights.
    # o_ref: (tm, tn) logits.
    o_ref[...] = jnp.dot(
        x_ref[...], w_ref[...], preferred_element_type=jnp.float32
    ).astype(o_ref.dtype)


def _round_up(a, b):
    return -(-a // b) * b


def pseudo_target_classifier_forward(
    x,
    weight,
    *,
    temperature=1.0,
    mxu_dtype=jnp.bfloat16,   # jnp.float32 for strict f32 parity (slower MXU feed)
    out_dtype=None,           # defaults to x.dtype (matches torch module)
    tm_max=256,
    tn_max=256,
    interpret=False,
):
    """x: (B, D) encodings; weight: (C, D) concatenated classifier weights (bias=False)."""
    B, D = x.shape
    C, D2 = weight.shape
    assert D == D2
    if out_dtype is None:
        out_dtype = x.dtype

    eps2 = jnp.float32(1e-24)  # (torch F.normalize eps = 1e-12) ** 2

    # ---- Hoisted (once-per-call) operand preparation -------------------------
    # v / max(||v||, eps) == v * rsqrt(max(||v||^2, eps^2))
    x32 = x.astype(jnp.float32)
    x_n = (x32 * jax.lax.rsqrt(
        jnp.maximum(jnp.sum(x32 * x32, axis=-1, keepdims=True), eps2))
           ).astype(mxu_dtype)

    inv_t = jnp.float32(1.0) / jnp.asarray(temperature, jnp.float32)
    w32 = weight.astype(jnp.float32)
    w_scale = jax.lax.rsqrt(
        jnp.maximum(jnp.sum(w32 * w32, axis=-1, keepdims=True), eps2)) * inv_t
    # Pre-transpose once to (D, C): natural (K, N) RHS for the MXU, no per-tile
    # transpose work inside the grid loop.
    w_nt = (w32 * w_scale).astype(mxu_dtype).T  # (D, C)

    # ---- Tile selection (VMEM-aware) -----------------------------------------
    in_bytes = jnp.dtype(mxu_dtype).itemsize
    out_bytes = jnp.dtype(out_dtype).itemsize

    tm = min(tm_max, _round_up(B, 8))      # sublane multiple
    tn = min(tn_max, _round_up(C, 128))    # lane-dense output stores

    def _footprint(tm_, tn_):
        # double-buffered inputs + double-buffered output
        return 2 * (tm_ * D + tn_ * D) * in_bytes + 2 * tm_ * tn_ * out_bytes

    vmem_budget = 20 * 2**20  # safe for v7x (32 MiB scoped / 64 MiB physical)
    # TODO(synk): for very large D (>= ~8K features) add a K grid axis with an f32
    # VMEM accumulator instead of shrinking full-D tiles.
    while _footprint(tm, tn) > vmem_budget and (tn > 128 or tm > 8):
        if tn >= tm and tn > 128:
            tn = max(128, (tn // 2 // 128) * 128)
        elif tm > 8:
            tm = max(8, _round_up(tm // 2, 8))
        else:
            break

    B_pad = _round_up(B, tm)
    C_pad = _round_up(C, tn)

    x_p = x_n if B_pad == B else jnp.pad(x_n, ((0, B_pad - B), (0, 0)))
    w_p = w_nt if C_pad == C else jnp.pad(w_nt, ((0, 0), (0, C_pad - C)))

    b_tiles = B_pad // tm
    c_tiles = C_pad // tn

    # ---- Grid order: keep the LARGER operand as the once-read (outer) operand --
    if C_pad >= B_pad:
        # W resident per outer step (read once total); x streamed on the inner axis.
        grid = (c_tiles, b_tiles)
        x_spec = pl.BlockSpec((tm, D), lambda j, i: (i, 0))
        w_spec = pl.BlockSpec((D, tn), lambda j, i: (0, j))
        o_spec = pl.BlockSpec((tm, tn), lambda j, i: (i, j))
    else:
        # x resident per outer step; W streamed on the inner axis.
        grid = (b_tiles, c_tiles)
        x_spec = pl.BlockSpec((tm, D), lambda i, j: (i, 0))
        w_spec = pl.BlockSpec((D, tn), lambda i, j: (0, j))
        o_spec = pl.BlockSpec((tm, tn), lambda i, j: (i, j))

    vmem_limit = min(48 * 2**20, max(32 * 2**20, 2 * _footprint(tm, tn)))

    out = pl.pallas_call(
        _cosine_logits_kernel,
        out_shape=jax.ShapeDtypeStruct((B_pad, C_pad), out_dtype),
        grid_spec=pltpu.PrefetchScalarGridSpec(
            num_scalar_prefetch=0,
            grid=grid,
            in_specs=[x_spec, w_spec],
            out_specs=o_spec,
        ),
        compiler_params=pltpu.CompilerParams(
            dimension_semantics=("parallel", "parallel"),
            vmem_limit_bytes=int(vmem_limit),
        ),
        interpret=interpret,
    )(x_p, w_p)

    if B_pad != B or C_pad != C:
        out = out[:B, :C]
    return out


def _ref_forward_f32(x, w, temperature=1.0):
    xn = x / jnp.maximum(jnp.linalg.norm(x, axis=-1, keepdims=True), 1e-12)
    wn = w / jnp.maximum(jnp.linalg.norm(w, axis=-1, keepdims=True), 1e-12)
    return (xn @ wn.T) / temperature


if __name__ == "__main__":
    # TODO(synk): `rv` buffer, Hungarian assignment (scipy linear_sum_assignment) and
    # the reserve-vector SGD loop are training-time utilities, not part of forward().
    key = jax.random.PRNGKey(0)
    kx, kw, kx2, kw2 = jax.random.split(key, 4)

    # --- small, module-consistent shapes: num_features=32, base_class=16, batch=8 ---
    batch, num_features, base_class = 8, 32, 16
    x = jax.random.normal(kx, (batch, num_features), dtype=jnp.float32)
    w = jax.random.normal(kw, (base_class, num_features), dtype=jnp.float32) * 0.1

    out = pseudo_target_classifier_forward(x, w)
    out = jax.block_until_ready(out)
    assert out.shape == (batch, base_class)
    assert out.dtype == x.dtype

    ref = _ref_forward_f32(x, w)
    # bf16 MXU feed -> cosine logits in [-1, 1] match the f32 reference to ~1e-3.
    assert jnp.allclose(out, ref, atol=1e-2), float(jnp.max(jnp.abs(out - ref)))

    # --- second check: padding + multi-tile 2D grid + grid-order swap (C > B tiles)
    B2, D2, C2 = 272, 96, 300
    x2 = jax.random.normal(kx2, (B2, D2), dtype=jnp.float32)
    w2 = jax.random.normal(kw2, (C2, D2), dtype=jnp.float32) * 0.1
    out2 = jax.block_until_ready(pseudo_target_classifier_forward(x2, w2))
    assert out2.shape == (B2, C2)
    ref2 = _ref_forward_f32(x2, w2)
    assert jnp.allclose(out2, ref2, atol=1e-2), float(jnp.max(jnp.abs(out2 - ref2)))

    print("KERNEL_OK")
</pallas_src>

<mosaic_0001>
module attributes {stable_mosaic.version = 11 : i64} {
  func.func @_cosine_logits_kernel(%arg0: i32, %arg1: i32, %arg2: memref<8x32xbf16, #tpu.memory_space<vmem>>, %arg3: memref<32x128xbf16, #tpu.memory_space<vmem>>, %arg4: memref<8x128xf32, #tpu.memory_space<vmem>>) attributes {dimension_semantics = [#tpu.dimension_semantics<parallel>, #tpu.dimension_semantics<parallel>], iteration_bounds = array<i64: 1, 1>, scalar_prefetch = 0 : i64, scratch_operands = 0 : i64, tpu.core_type = #tpu.core_type<tc>, window_params = [{transform_indices = @transform_0, window_bounds = array<i64: 8, 32>}, {transform_indices = @transform_1, window_bounds = array<i64: 32, 128>}, {transform_indices = @transform_2, window_bounds = array<i64: 8, 128>}]} {
    %c0 = arith.constant 0 : index
    %c0_0 = arith.constant 0 : index
    %0 = vector.load %arg2[%c0, %c0_0] : memref<8x32xbf16, #tpu.memory_space<vmem>>, vector<8x32xbf16>
    %c0_1 = arith.constant 0 : index
    %c0_2 = arith.constant 0 : index
    %1 = vector.load %arg3[%c0_1, %c0_2] : memref<32x128xbf16, #tpu.memory_space<vmem>>, vector<32x128xbf16>
    %cst = arith.constant dense<0.000000e+00> : vector<8x128xf32>
    %2 = tpu.matmul %0, %1, %cst {dimension_numbers = #tpu.dot_dimension_numbers<[1], [0], [0], [1], [0, 0, 1, 1], [], []>} : vector<8x32xbf16>, vector<32x128xbf16>, vector<8x128xf32> -> vector<8x128xf32>
    %c0_3 = arith.constant 0 : index
    %c0_4 = arith.constant 0 : index
    %3 = vector.load %arg4[%c0_3, %c0_4] : memref<8x128xf32, #tpu.memory_space<vmem>>, vector<8x128xf32>
    tpu.vector_store %arg4[%c0_3, %c0_4], %2 {strides = array<i32>} : memref<8x128xf32, #tpu.memory_space<vmem>>, vector<8x128xf32>,
    return
  }
  func.func @transform_0(%arg0: i32, %arg1: i32) -> (i32, i32) {
    %c0_i32 = arith.constant 0 : i32
    %c0_i32_0 = arith.constant 0 : i32
    return %arg1, %c0_i32 : i32, i32
  }
  func.func @transform_1(%arg0: i32, %arg1: i32) -> (i32, i32) {
    %c0_i32 = arith.constant 0 : i32
    %c0_i32_0 = arith.constant 0 : i32
    return %c0_i32, %arg0 : i32, i32
  }
  func.func @transform_2(%arg0: i32, %arg1: i32) -> (i32, i32) {
    %c0_i32 = arith.constant 0 : i32
    return %arg1, %arg0 : i32, i32
  }
}

</mosaic_0001>

<llo_original>
// kernel: tpu_custom_call.1
$region0: #{tpu_custom_call.1}
  #allocation0 [shape = 'u32[]', space=smem, size = 0x4, offset = 0x4, fixed_abs, tag = 'smem constant byte address 0x4 - core index']
  #allocation1 [shape = 'u32[144,128]{1,0:T(1,128)}', space=vmem, size = 0x12000, scoped, tag = 'internal scratch']
  %s0 = inlined_call_operand.hbm [shape: bf16[8,32], index: 0, kind: input, shape index: {}]
  %s1 = inlined_call_operand.hbm [shape: bf16[32,128], index: 1, kind: input, shape index: {}]
  %s2 = inlined_call_operand.hbm [shape: f32[8,128], index: 2, kind: output, shape index: {}]
  %s3 = sld [smem:[#allocation0]]
  $region26: #{tpu_custom_call.1} parent=0
    _
  %s5 = ssub.s32 1, %s3
  %s6 = scalar_select 0, %s5, %s3
  $region1: #{tpu_custom_call.1} parent=0
    #allocation2 [shape = 'u8[2048]{0}', space=vmem, size = 0x800, scoped, tag = 'input window, operand 0, single buffered']
    #allocation3 [shape = 's32[1]{0}', space=sflag, size = 0x4, scoped, tag = 'scoped memory for tpu_custom_call.1']
    #allocation4 [shape = 's32[1]{0}', space=sflag, size = 0x4, scoped, tag = 'scoped memory for tpu_custom_call.1']
    #allocation5 [shape = 'u8[8192]{0}', space=vmem, size = 0x2000, scoped, tag = 'input window, operand 1, single buffered']
    #allocation6 [shape = 's32[1]{0}', space=sflag, size = 0x4, scoped, tag = 'scoped memory for tpu_custom_call.1']
    #allocation7 [shape = 'u8[4096]{0}', space=vmem, size = 0x1000, scoped, tag = 'output window, operand 0, single buffered']
    %7 = vsyncpa [#allocation3], 0
    %8 = vsyncpa [#allocation6], 0
    %9 = vsyncpa [#allocation4], 0
    // Predicated region
    $region2: #{tpu_custom_call.1} parent=1 // pred_check
      _
    $region3: #{tpu_custom_call.1} parent=1 // pred_check_branch
      %11 = sbr.rel (0) target = $region5
    $region4: #{tpu_custom_call.1} parent=1 // pred_region
      %s13 = ssub.s32 64, 64
      %14 = vsyncadd [#allocation3], %s13
      %s16 = sshll.u32 [#allocation2], 4
      %s17 = int_to_ptr.vmem [resolvable:$true] %s16
      %19 = dma.hbm_to_vmem [thread:$0]  %s0, 64, %s17, [#allocation3]
    $region5: #{tpu_custom_call.1} parent=1 // pred_fallthru
      _
    // Predicated region
    $region6: #{tpu_custom_call.1} parent=1 // pred_check
      _
    $region7: #{tpu_custom_call.1} parent=1 // pred_check_branch
      %21 = sbr.rel (0) target = $region9
    $region8: #{tpu_custom_call.1} parent=1 // pred_region
      %s23 = ssub.s32 256, 256
      %24 = vsyncadd [#allocation6], %s23
      %s25 = sshll.u32 [#allocation5], 4
      %s26 = int_to_ptr.vmem [resolvable:$true] %s25
      %31 = dma.hbm_to_vmem [thread:$0]  %s1, 256, %s26, [#allocation6], 64, 64, 4
    $region9: #{tpu_custom_call.1} parent=1 // pred_fallthru
      _
    // Predicated region
    $region10: #{tpu_custom_call.1} parent=1 // pred_check
      _
    $region11: #{tpu_custom_call.1} parent=1 // pred_check_branch
      %33 = sbr.rel (0) target = $region13
    $region12: #{tpu_custom_call.1} parent=1 // pred_region
      %34 = dma.done [#allocation3], 64
    $region13: #{tpu_custom_call.1} parent=1 // pred_fallthru
      _
    // Predicated region
    $region14: #{tpu_custom_call.1} parent=1 // pred_check
      _
    $region15: #{tpu_custom_call.1} parent=1 // pred_check_branch
      %36 = sbr.rel (0) target = $region17
    $region16: #{tpu_custom_call.1} parent=1 // pred_region
      %37 = dma.done [#allocation6], 256
    $region17: #{tpu_custom_call.1} parent=1 // pred_fallthru
      _
    %v39 = vld [vmem:[#allocation2] sm:$0xf]
    %v40 = vld [vmem:[#allocation5] sm:$0xf]
    %v41 = vld [vmem:[#allocation5 + $0x4] sm:$0xf]
    %v42 = vld [vmem:[#allocation5 + $0x8] sm:$0xf]
    %v43 = vld [vmem:[#allocation5 + $0xc] sm:$0xf]
    %v48 = vunpack.c.l.b16 %v40
    %v49 = vunpack.c.l.b16 %v41
    %v50 = vunpack.c.l.b16 %v42
    %v51 = vunpack.c.l.b16 %v43
    %v52 = vpack.c.b16 %v49, %v48
    %v53 = vpack.c.b16 %v51, %v50
    %vm56 = vcmask 261120
    %v58 = vsel %vm56, %v39, 0
    %60 = vmatprep.subr.bf16.mxu0 0
    %61 = vmatpush1.bf16.msra.mxu0 0
    %62 = vmatprep.subr.bf16.mxu0 0
    %63 = vmatpush1.bf16.msra.mxu0 0
    %64 = vmatprep.subr.bf16.mxu0 0
    %65 = vmatpush1.bf16.msra.mxu0 0
    %66 = vmatprep.subr.bf16.mxu0 0
    %67 = vmatpush1.bf16.msra.mxu0 0
    %68 = vmatprep.subr.bf16.mxu0 0
    %69 = vmatpush1.bf16.msra.mxu0 0
    %70 = vmatprep.subr.bf16.mxu0 0
    %71 = vmatpush1.bf16.msra.mxu0 0
    %72 = vmatprep.subr.bf16.mxu0 0
    %73 = vmatpush1.bf16.msra.mxu0 %v53
    %74 = vmatprep.subr.bf16.mxu0 0
    %75 = vmatpush1.bf16.msra.mxu0 %v52
    %76 = vmatprep.subr.bf16.mxu0 0
    %77 = vmatpush2.bf16.msra.mxu0 0
    %78 = vmatprep.subr.bf16.mxu0 0
    %79 = vmatpush2.bf16.msra.mxu0 0
    %80 = vmatprep.subr.bf16.mxu0 0
    %81 = vmatpush2.bf16.msra.mxu0 0
    %82 = vmatprep.subr.bf16.mxu0 0
    %83 = vmatpush2.bf16.msra.mxu0 0
    %84 = vmatprep.subr.bf16.mxu0 0
    %85 = vmatpush2.bf16.msra.mxu0 0
    %86 = vmatprep.subr.bf16.mxu0 0
    %87 = vmatpush2.bf16.msra.mxu0 0
    %88 = vmatprep.subr.bf16.mxu0 0
    %89 = vmatpush2.bf16.msra.mxu0 0
    %90 = vmatprep.subr.bf16.mxu0 0
    %91 = vmatpush2.bf16.msra.mxu0 0
    %92 = vmatprep.mubr.bf16.mxu0 0
    %93 = vmatmul.mubr.bf16.gmra.mxu0 %v58
    %v94 = vpop.f32.mrf.mxu0
    %v95 = vadd.f32 0.0, %v94
    %v96 = vpop.f32.mrf.mxu0
    %v97 = vpop.f32.mrf.mxu0
    %v98 = vpop.f32.mrf.mxu0
    %99 = vdwg.mxu0
    %100 = vst [vmem:[#allocation7] sm:$0xff] %v95
    // Predicated region
    $region18: #{tpu_custom_call.1} parent=1 // pred_check
      _
    $region19: #{tpu_custom_call.1} parent=1 // pred_check_branch
      %102 = sbr.rel (0) target = $region21
    $region20: #{tpu_custom_call.1} parent=1 // pred_region
      %s104 = ssub.s32 128, 128
      %105 = vsyncadd [#allocation4], %s104
      %s107 = sshll.u32 [#allocation7], 4
      %s108 = int_to_ptr.vmem [resolvable:$true] %s107
      %110 = dma.vmem_to_hbm [thread:$0]  %s108, 128, %s2, [#allocation4]
    $region21: #{tpu_custom_call.1} parent=1 // pred_fallthru
      _
    // Predicated region
    $region22: #{tpu_custom_call.1} parent=1 // pred_check
      _
    $region23: #{tpu_custom_call.1} parent=1 // pred_check_branch
      %112 = sbr.rel (0) target = $region25
    $region24: #{tpu_custom_call.1} parent=1 // pred_region
      %113 = dma.done [#allocation4], 128
    $region25: #{tpu_custom_call.1} parent=1 // pred_fallthru
      _
    %114 = vsyncpa [#allocation3], 1
    %115 = vsyncpa [#allocation6], 1
    %116 = vsyncpa [#allocation4], 1

</llo_original>
